<compile_context>
chip_gen: v5e
topology: v5e:2x2
jax: 0.10.0
libtpu: 0.0.40
codegen_flags: <defaults>
</compile_context>

<pallas_src>
import functools

import jax
import jax.numpy as jnp
from jax.experimental import pallas as pl
from jax.experimental.pallas import tpu as pltpu


def _round_up(v, m):
    return (v + m - 1) // m * m


def _pick_tiles(Np):
    """Np is a multiple of 128.  tk: biggest power-of-two tile <= 2048 dividing Np.
    tm: biggest tile dividing Np that still yields >= 2 row tiles (v7x dual-TC sharding)."""
    tk = 128
    for cand in (2048, 1024, 512, 256, 128):
        if Np % cand == 0:
            tk = cand
            break
    tm = 128
    for cand in (512, 256, 128, 64, 32, 16, 8):
        if Np % cand == 0 and Np // cand >= 2:
            tm = cand
            break
    return tm, tk


# ---------------------------------------------------------------------------
# Kernel A: per-layer projections hoisted out of the aggregation grid.
#   self_out = x @ W_self + bias   (f32)      xwn = x @ W_neigh   (bf16 MXU RHS)
# ---------------------------------------------------------------------------
def _project_kernel(x_ref, ws_ref, wn_ref, b_ref, self_ref, xwn_ref):
    x = x_ref[...]
    self_ref[...] = (jnp.dot(x, ws_ref[...], preferred_element_type=jnp.float32)
                     + b_ref[...]).astype(self_ref.dtype)
    xwn_ref[...] = jnp.dot(x, wn_ref[...],
                           preferred_element_type=jnp.float32).astype(xwn_ref.dtype)


def sage_project(x, w_self, w_neigh, bias, *, tm):
    Np, FIP = x.shape
    FOP = w_self.shape[1]
    n_row = Np // tm

    flops = int(2 * 2 * Np * FIP * FOP)
    bytes_accessed = int(x.size * 4 + (w_self.size + w_neigh.size + bias.size) * 4
                         + Np * FOP * (4 + 2))

    return pl.pallas_call(
        _project_kernel,
        out_shape=(jax.ShapeDtypeStruct((Np, FOP), jnp.float32),     # self_out
                   jax.ShapeDtypeStruct((Np, FOP), jnp.bfloat16)),   # xwn
        grid_spec=pltpu.PrefetchScalarGridSpec(
            num_scalar_prefetch=0,
            grid=(n_row,),
            in_specs=[
                pl.BlockSpec((tm, FIP), lambda i: (i, 0)),    # x row tile
                pl.BlockSpec((FIP, FOP), lambda i: (0, 0)),   # W_self  (VMEM-resident)
                pl.BlockSpec((FIP, FOP), lambda i: (0, 0)),   # W_neigh (VMEM-resident)
                pl.BlockSpec((1, FOP), lambda i: (0, 0)),     # bias
            ],
            out_specs=(pl.BlockSpec((tm, FOP), lambda i: (i, 0)),
                       pl.BlockSpec((tm, FOP), lambda i: (i, 0))),
        ),
        compiler_params=pltpu.CompilerParams(
            dimension_semantics=("parallel",),
            vmem_limit_bytes=48 * 1024 * 1024,
        ),
        cost_estimate=pl.CostEstimate(flops=flops, transcendentals=0,
                                      bytes_accessed=bytes_accessed),
    )(x, w_self, w_neigh, bias)


# ---------------------------------------------------------------------------
# Kernel B: adjacency aggregation + finalize.
#   acc += adj_bf16 @ xwn_bf16 ;  out = inv_deg * acc + self_out [+ relu]
# ---------------------------------------------------------------------------
def _aggregate_kernel(adj_ref, xwn_ref, invdeg_ref, self_ref, out_ref, acc_ref, *,
                      apply_relu: bool):
    k = pl.program_id(1)

    @pl.when(k == 0)
    def _init():
        acc_ref[...] = jnp.zeros_like(acc_ref)

    # bf16 x bf16 straight into the MXU, f32 accumulation in VMEM scratch.
    acc_ref[...] += jnp.dot(adj_ref[...], xwn_ref[...],
                            preferred_element_type=jnp.float32)

    @pl.when(k == pl.num_programs(1) - 1)
    def _finalize():
        out = invdeg_ref[...] * acc_ref[...] + self_ref[...]
        if apply_relu:
            out = jnp.maximum(out, 0.0)
        out_ref[...] = out.astype(out_ref.dtype)


def sage_aggregate(adj_bf16, xwn_bf16, inv_deg, self_out, *, apply_relu, tm, tk):
    Np = adj_bf16.shape[0]
    FOP = xwn_bf16.shape[1]
    n_row = Np // tm
    n_k = Np // tk

    flops = int(2 * Np * Np * FOP)
    bytes_accessed = int(Np * Np * 2                 # bf16 adjacency (dominant stream)
                         + n_row * Np * FOP * 2      # bf16 xwn, re-read per row tile
                         + 2 * Np * FOP * 4          # self_out read + out write
                         + Np * 4)                   # inv_deg

    kernel = functools.partial(_aggregate_kernel, apply_relu=apply_relu)
    return pl.pallas_call(
        kernel,
        out_shape=jax.ShapeDtypeStruct((Np, FOP), jnp.float32),
        grid_spec=pltpu.PrefetchScalarGridSpec(
            num_scalar_prefetch=0,
            grid=(n_row, n_k),
            in_specs=[
                pl.BlockSpec((tm, tk), lambda i, k: (i, k)),     # adjacency tile (bf16)
                pl.BlockSpec((tk, FOP), lambda i, k: (k, 0)),    # projected features (bf16)
                pl.BlockSpec((tm, 1), lambda i, k: (i, 0)),      # 1/deg row block
                pl.BlockSpec((tm, FOP), lambda i, k: (i, 0)),    # hoisted self path (f32)
            ],
            out_specs=pl.BlockSpec((tm, FOP), lambda i, k: (i, 0)),
            scratch_shapes=[pltpu.VMEM((tm, FOP), jnp.float32)],
        ),
        compiler_params=pltpu.CompilerParams(
            dimension_semantics=("parallel", "arbitrary"),
            # Working set at tm=512/tk=2048 is ~7 MiB double-buffered; 48 MiB cap is safe on
            # v7x (64 MiB/TC) and leaves headroom on v5e/v6e (128 MiB).
            vmem_limit_bytes=48 * 1024 * 1024,
        ),
        cost_estimate=pl.CostEstimate(flops=flops, transcendentals=0,
                                      bytes_accessed=bytes_accessed),
    )(adj_bf16, xwn_bf16, inv_deg, self_out)


def graphsage_forward(adj, x, params):
    """Full GraphSAGE.forward: conv1 -> relu -> conv2 (conv3 intentionally unused)."""
    N = adj.shape[0]
    in_feats = x.shape[1]
    h_feats = params["w1s"].shape[1]

    # Pad node count only to 128 lanes (padding waste stays O(N*128), not O(tk^2)).
    Np = _round_up(N, 128)
    tm, tk = _pick_tiles(Np)

    FIP = _round_up(in_feats, 128)   # lane-dense input features
    FHP = _round_up(h_feats, 128)    # lane-dense hidden/output features (FOP=128 fills MXU N)

    f32 = jnp.float32
    # degree / 1/deg computed once outside the kernel (self-loops guarantee deg >= 1)
    deg = jnp.sum(adj, axis=1, keepdims=True)
    inv_deg = jnp.where(deg > 0, 1.0 / deg, 0.0)

    # Pad once; the 0/1 adjacency is exact in bf16 and reused by both layers.
    adj_p = jnp.zeros((Np, Np), f32).at[:N, :N].set(adj).astype(jnp.bfloat16)
    inv_deg_p = jnp.zeros((Np, 1), f32).at[:N].set(inv_deg)
    x_p = jnp.zeros((Np, FIP), f32).at[:N, :in_feats].set(x)

    w1s = jnp.zeros((FIP, FHP), f32).at[:in_feats, :h_feats].set(params["w1s"])
    w1n = jnp.zeros((FIP, FHP), f32).at[:in_feats, :h_feats].set(params["w1n"])
    b1 = jnp.zeros((1, FHP), f32).at[:, :h_feats].set(params["b1"])
    w2s = jnp.zeros((FHP, FHP), f32).at[:h_feats, :h_feats].set(params["w2s"])
    w2n = jnp.zeros((FHP, FHP), f32).at[:h_feats, :h_feats].set(params["w2n"])
    b2 = jnp.zeros((1, FHP), f32).at[:, :h_feats].set(params["b2"])

    # conv1 + relu
    self1, xwn1 = sage_project(x_p, w1s, w1n, b1, tm=tm)
    h = sage_aggregate(adj_p, xwn1, inv_deg_p, self1, apply_relu=True, tm=tm, tk=tk)
    # conv2
    self2, xwn2 = sage_project(h, w2s, w2n, b2, tm=tm)
    h = sage_aggregate(adj_p, xwn2, inv_deg_p, self2, apply_relu=False, tm=tm, tk=tk)
    return h[:N, :h_feats]


def _init_linear_weight(key, fan_in, fan_out):
    # deterministic, torch.nn.Linear-style uniform init; stored as (fan_in, fan_out)
    scale = 1.0 / jnp.sqrt(jnp.float32(fan_in))
    return jax.random.uniform(key, (fan_in, fan_out), dtype=jnp.float32,
                              minval=-scale, maxval=scale)


if __name__ == "__main__":
    key = jax.random.PRNGKey(0)
    N = 64               # number of nodes (synthetic stand-in for the Reddit graph)
    in_feats = 32
    h_feats = 32
    num_classes = 8

    k_adj, k_x, k1, k2, k3, k4, k5, k6 = jax.random.split(key, 8)

    # synthetic sparse-ish graph with self-loops (RedditDataset(self_loop=True) stand-in)
    adj = (jax.random.uniform(k_adj, (N, N)) < 0.1).astype(jnp.float32)
    adj = jnp.maximum(adj, jnp.eye(N, dtype=jnp.float32))       # add self-loops
    x = jax.random.normal(k_x, (N, in_feats), dtype=jnp.float32)

    params = {
        # conv1: in_feats -> h_feats
        "w1s": _init_linear_weight(k1, in_feats, h_feats),
        "w1n": _init_linear_weight(k2, in_feats, h_feats),
        "b1": jnp.zeros((1, h_feats), jnp.float32),
        # conv2: h_feats -> h_feats
        "w2s": _init_linear_weight(k3, h_feats, h_feats),
        "w2n": _init_linear_weight(k4, h_feats, h_feats),
        "b2": jnp.zeros((1, h_feats), jnp.float32),
        # conv3 params exist in __init__ but are never used in forward
        "w3s": _init_linear_weight(k5, h_feats, num_classes),
        "w3n": _init_linear_weight(k6, h_feats, num_classes),
        "b3": jnp.zeros((1, num_classes), jnp.float32),
    }

    out = jax.block_until_ready(graphsage_forward(adj, x, params))

    # pure-JAX reference (standard DGL 'mean' SAGEConv form)
    deg = jnp.sum(adj, axis=1, keepdims=True)

    def ref_layer(xx, ws, wn, b, relu):
        hn = (adj @ xx) / deg
        o = xx @ ws + hn @ wn + b
        return jnp.maximum(o, 0.0) if relu else o

    ref = ref_layer(ref_layer(x, params["w1s"], params["w1n"], params["b1"], True),
                    params["w2s"], params["w2n"], params["b2"], False)

    assert out.shape == (N, h_feats)
    err = float(jnp.max(jnp.abs(out - ref)))
    # bf16 storage of the projected neighbor features (deliberate HBM optimization) bounds
    # accuracy at ~bf16 level, hence the relaxed tolerance vs a pure-f32 reference.
    assert jnp.allclose(out, ref, atol=5e-2, rtol=5e-2), err

    print("KERNEL_OK")
</pallas_src>

<mosaic_0001>
module attributes {stable_mosaic.version = 11 : i64} {
  func.func @_project_kernel(%arg0: i32, %arg1: memref<64x128xf32, #tpu.memory_space<vmem>>, %arg2: memref<128x128xf32, #tpu.memory_space<vmem>>, %arg3: memref<128x128xf32, #tpu.memory_space<vmem>>, %arg4: memref<1x128xf32, #tpu.memory_space<vmem>>, %arg5: memref<64x128xf32, #tpu.memory_space<vmem>>, %arg6: memref<64x128xbf16, #tpu.memory_space<vmem>>) attributes {dimension_semantics = [#tpu.dimension_semantics<parallel>], iteration_bounds = array<i64: 2>, scalar_prefetch = 0 : i64, scratch_operands = 0 : i64, tpu.core_type = #tpu.core_type<tc>, window_params = [{transform_indices = @transform_0, window_bounds = array<i64: 64, 128>}, {pipeline_mode = #tpu.pipeline_mode<synchronous>, transform_indices = @transform_1, window_bounds = array<i64: 128, 128>}, {pipeline_mode = #tpu.pipeline_mode<synchronous>, transform_indices = @transform_2, window_bounds = array<i64: 128, 128>}, {pipeline_mode = #tpu.pipeline_mode<synchronous>, transform_indices = @transform_3, window_bounds = array<i64: 1, 128>}, {transform_indices = @transform_4, window_bounds = array<i64: 64, 128>}, {transform_indices = @transform_5, window_bounds = array<i64: 64, 128>}]} {
    %c0 = arith.constant 0 : index
    %c0_0 = arith.constant 0 : index
    %0 = vector.load %arg1[%c0, %c0_0] : memref<64x128xf32, #tpu.memory_space<vmem>>, vector<64x128xf32>
    %c0_1 = arith.constant 0 : index
    %c0_2 = arith.constant 0 : index
    %1 = vector.load %arg2[%c0_1, %c0_2] : memref<128x128xf32, #tpu.memory_space<vmem>>, vector<128x128xf32>
    %cst = arith.constant dense<0.000000e+00> : vector<64x128xf32>
    %2 = tpu.matmul %0, %1, %cst {dimension_numbers = #tpu.dot_dimension_numbers<[1], [0], [0], [1], [0, 0, 1, 1], [], []>} : vector<64x128xf32>, vector<128x128xf32>, vector<64x128xf32> -> vector<64x128xf32>
    %c0_3 = arith.constant 0 : index
    %c0_4 = arith.constant 0 : index
    %3 = vector.load %arg4[%c0_3, %c0_4] : memref<1x128xf32, #tpu.memory_space<vmem>>, vector<1x128xf32>
    %4 = vector.broadcast %3 : vector<1x128xf32> to vector<64x128xf32>
    %5 = arith.addf %2, %4 : vector<64x128xf32>
    %c0_5 = arith.constant 0 : index
    %c0_6 = arith.constant 0 : index
    %6 = vector.load %arg5[%c0_5, %c0_6] : memref<64x128xf32, #tpu.memory_space<vmem>>, vector<64x128xf32>
    tpu.vector_store %arg5[%c0_5, %c0_6], %5 {strides = array<i32>} : memref<64x128xf32, #tpu.memory_space<vmem>>, vector<64x128xf32>,
    %c0_7 = arith.constant 0 : index
    %c0_8 = arith.constant 0 : index
    %7 = vector.load %arg3[%c0_7, %c0_8] : memref<128x128xf32, #tpu.memory_space<vmem>>, vector<128x128xf32>
    %cst_9 = arith.constant dense<0.000000e+00> : vector<64x128xf32>
    %8 = tpu.matmul %0, %7, %cst_9 {dimension_numbers = #tpu.dot_dimension_numbers<[1], [0], [0], [1], [0, 0, 1, 1], [], []>} : vector<64x128xf32>, vector<128x128xf32>, vector<64x128xf32> -> vector<64x128xf32>
    %9 = arith.truncf %8 : vector<64x128xf32> to vector<64x128xbf16>
    %c0_10 = arith.constant 0 : index
    %c0_11 = arith.constant 0 : index
    %10 = vector.load %arg6[%c0_10, %c0_11] : memref<64x128xbf16, #tpu.memory_space<vmem>>, vector<64x128xbf16>
    tpu.vector_store %arg6[%c0_10, %c0_11], %9 {strides = array<i32>} : memref<64x128xbf16, #tpu.memory_space<vmem>>, vector<64x128xbf16>,
    return
  }
  func.func @transform_0(%arg0: i32) -> (i32, i32) {
    %c0_i32 = arith.constant 0 : i32
    %c0_i32_0 = arith.constant 0 : i32
    return %arg0, %c0_i32 : i32, i32
  }
  func.func @transform_1(%arg0: i32) -> (i32, i32) {
    %c0_i32 = arith.constant 0 : i32
    %c0_i32_0 = arith.constant 0 : i32
    %c0_i32_1 = arith.constant 0 : i32
    return %c0_i32, %c0_i32_0 : i32, i32
  }
  func.func @transform_2(%arg0: i32) -> (i32, i32) {
    %c0_i32 = arith.constant 0 : i32
    %c0_i32_0 = arith.constant 0 : i32
    %c0_i32_1 = arith.constant 0 : i32
    return %c0_i32, %c0_i32_0 : i32, i32
  }
  func.func @transform_3(%arg0: i32) -> (i32, i32) {
    %c0_i32 = arith.constant 0 : i32
    %c0_i32_0 = arith.constant 0 : i32
    %c0_i32_1 = arith.constant 0 : i32
    return %c0_i32, %c0_i32_0 : i32, i32
  }
  func.func @transform_4(%arg0: i32) -> (i32, i32) {
    %c0_i32 = arith.constant 0 : i32
    %c0_i32_0 = arith.constant 0 : i32
    return %arg0, %c0_i32 : i32, i32
  }
  func.func @transform_5(%arg0: i32) -> (i32, i32) {
    %c0_i32 = arith.constant 0 : i32
    %c0_i32_0 = arith.constant 0 : i32
    return %arg0, %c0_i32 : i32, i32
  }
}

</mosaic_0001>

<llo_original>
// kernel: tpu_custom_call.1
$region0: #{tpu_custom_call.1}
  #allocation0 [shape = 'u32[]', space=smem, size = 0x4, offset = 0x4, fixed_abs, tag = 'smem constant byte address 0x4 - core index']
  #allocation1 [shape = 'u32[72,128]{1,0:T(1,128)}', space=vmem, size = 0x9000, scoped, tag = 'internal scratch']
  %s0 = inlined_call_operand.hbm [shape: f32[128,128], index: 0, kind: input, shape index: {}]
  %s1 = inlined_call_operand.hbm [shape: f32[128,128], index: 1, kind: input, shape index: {}]
  %s2 = inlined_call_operand.hbm [shape: f32[128,128], index: 2, kind: input, shape index: {}]
  %s3 = inlined_call_operand.vmem [shape: f32[1,128], index: 3, kind: input, shape index: {}]
  %s4 = inlined_call_operand.hbm [shape: f32[128,128], index: 4, kind: output, shape index: {0}]
  %s5 = inlined_call_operand.hbm [shape: bf16[128,128], index: 5, kind: output, shape index: {1}]
  %6 = xla_tuple %s4, %s5
  %s7 = sld [smem:[#allocation0]]
  $region69: #{tpu_custom_call.1} parent=0
    _
  %s9 = ssub.s32 1, %s7
  %s10 = scalar_select 0, %s9, %s7
  $region1: #{tpu_custom_call.1} parent=0
    #allocation2 [shape = 'u8[65536]{0}', space=vmem, size = 0x10000, scoped, tag = 'input window, operand 0']
    #allocation3 [shape = 's32[2]{0}', space=sflag, size = 0x8, scoped, tag = 'scoped memory for tpu_custom_call.1']
    #allocation4 [shape = 's32[2]{0}', space=sflag, size = 0x8, scoped, tag = 'scoped memory for tpu_custom_call.1']
    #allocation5 [shape = 'u8[65536]{0}', space=vmem, size = 0x10000, scoped, tag = 'input window, operand 1, single buffered']
    #allocation6 [shape = 's32[1]{0}', space=sflag, size = 0x4, scoped, tag = 'scoped memory for tpu_custom_call.1']
    #allocation7 [shape = 'u8[65536]{0}', space=vmem, size = 0x10000, scoped, tag = 'input window, operand 2, single buffered']
    #allocation8 [shape = 'u8[65536]{0}', space=vmem, size = 0x10000, scoped, tag = 'output window, operand 0']
    #allocation9 [shape = 'u8[32768]{0}', space=vmem, size = 0x8000, scoped, tag = 'output window, operand 1']
    #allocation10 [shape = 's32[2]{0}', space=sflag, size = 0x8, scoped, tag = 'scoped memory for tpu_custom_call.1']
    %11 = vsyncpa [#allocation3], 0
    %s12 = scalar_lea.sflag [#allocation3], 1
    %13 = vsyncpa %s12, 0
    %14 = vsyncpa [#allocation6], 0
    %15 = vsyncpa [#allocation4], 0
    %s16 = scalar_lea.sflag [#allocation4], 1
    %17 = vsyncpa %s16, 0
    %18 = vsyncpa [#allocation10], 0
    %s19 = scalar_lea.sflag [#allocation10], 1
    %20 = vsyncpa %s19, 0
    loop: start=0, step=1, limit=4
    $region2: #{tpu_custom_call.1} parent=1 // loop_pre_header
      _
    $region3: #{tpu_custom_call.1} parent=1 // loop_header
      %s22 = sphi 0, %s26
      %p23 = scmp.ge.s32.totalorder %s22, 4
      %s32 = sphi 0, %s34
      %s35 = sphi 0, %s32
      %s36 = sphi 0, %s35
      %s52 = sphi 0, %s36
      %s56 = sphi 0, %s56
      %s58 = sphi 0, %s56
      %s59 = sphi 0, %s58
      %s73 = sphi 0, %s59
      %s77 = sphi 0, %s77
      %s79 = sphi 0, %s77
      %s80 = sphi 0, %s79
      %s94 = sphi 0, %s80
      %s98 = sphi 0, %s98
      %s100 = sphi 0, %s98
      %s101 = sphi 0, %s100
      %s115 = sphi 0, %s101
      %s121 = sphi 0, %s123
      %s124 = sphi 0, %s121
      %s125 = sphi 0, %s124
      %s141 = sphi 0, %s125
      %s147 = sphi 0, %s149
      %s150 = sphi 0, %s147
      %s151 = sphi 0, %s150
      %s167 = sphi 0, %s151
    $region4: #{tpu_custom_call.1} parent=1 // loop_header_branch
      %25 = sbr.rel (%p23) target = $region8
    $region5: #{tpu_custom_call.1} parent=1 // loop_body
      %s27 = ssub.s32 %s22, 1
      %s28 = ssub.s32 %s22, 2
      %s29 = sadd.s32 %s22, 1
      %s30 = ssub.s32 %s22, %s29
      %p31 = scmp.eq.s32.totalorder %s30, 0
      %s33 = sadd.s32 %s32, 1
      %s34 = scalar_select %p31, %s32, %s33
      %p37 = pneg %p31
      %p38 = scmp.eq.s32.totalorder %s22, 1
      %p39 = por %p37, %p38
      %p40 = scmp.ne.s32.totalorder %s32, %s35
      %p41 = scmp.eq.s32.totalorder %s22, 0
      %p42 = por %p40, %p41
      %p43 = scmp.ne.s32.totalorder %s32, %s35
      %p44 = scmp.eq.s32.totalorder %s27, 1
      %p45 = por %p43, %p44
      %p46 = scmp.ne.s32.totalorder %s35, %s36
      %p47 = scmp.eq.s32.totalorder %s27, 0
      %p48 = por %p46, %p47
      %p49 = scmp.ne.s32.totalorder %s35, %s36
      %p50 = scmp.eq.s32.totalorder %s28, 1
      %p51 = por %p49, %p50
      %p53 = scmp.ne.s32.totalorder %s36, %s52
      %p54 = scmp.eq.s32.totalorder %s28, 0
      %p55 = por %p53, %p54
      %s57 = sadd.s32 %s56, 1
      %p60 = scmp.eq.s32.totalorder %s22, 1
      %p61 = scmp.ne.s32.totalorder %s56, %s58
      %p62 = scmp.eq.s32.totalorder %s22, 0
      %p63 = por %p61, %p62
      %p64 = scmp.ne.s32.totalorder %s56, %s58
      %p65 = scmp.eq.s32.totalorder %s27, 1
      %p66 = por %p64, %p65
      %p67 = scmp.ne.s32.totalorder %s58, %s59
      %p68 = scmp.eq.s32.totalorder %s27, 0
      %p69 = por %p67, %p68
      %p70 = scmp.ne.s32.totalorder %s58, %s59
      %p71 = scmp.eq.s32.totalorder %s28, 1
      %p72 = por %p70, %p71
      %p74 = scmp.ne.s32.totalorder %s59, %s73
      %p75 = scmp.eq.s32.totalorder %s28, 0
      %p76 = por %p74, %p75
      %s78 = sadd.s32 %s77, 1
      %p81 = scmp.eq.s32.totalorder %s22, 1
      %p82 = scmp.ne.s32.totalorder %s77, %s79
      %p83 = scmp.eq.s32.totalorder %s22, 0
      %p84 = por %p82, %p83
      %p85 = scmp.ne.s32.totalorder %s77, %s79
      %p86 = scmp.eq.s32.totalorder %s27, 1
      %p87 = por %p85, %p86
      %p88 = scmp.ne.s32.totalorder %s79, %s80
      %p89 = scmp.eq.s32.totalorder %s27, 0
      %p90 = por %p88, %p89
      %p91 = scmp.ne.s32.totalorder %s79, %s80
      %p92 = scmp.eq.s32.totalorder %s28, 1
      %p93 = por %p91, %p92
      %p95 = scmp.ne.s32.totalorder %s80, %s94
      %p96 = scmp.eq.s32.totalorder %s28, 0
      %p97 = por %p95, %p96
      %s99 = sadd.s32 %s98, 1
      %p102 = scmp.eq.s32.totalorder %s22, 1
      %p103 = scmp.ne.s32.totalorder %s98, %s100
      %p104 = scmp.eq.s32.totalorder %s22, 0
      %p105 = por %p103, %p104
      %p106 = scmp.ne.s32.totalorder %s98, %s100
      %p107 = scmp.eq.s32.totalorder %s27, 1
      %p108 = por %p106, %p107
      %p109 = scmp.ne.s32.totalorder %s100, %s101
      %p110 = scmp.eq.s32.totalorder %s27, 0
      %p111 = por %p109, %p110
      %p112 = scmp.ne.s32.totalorder %s100, %s101
      %p113 = scmp.eq.s32.totalorder %s28, 1
      %p114 = por %p112, %p113
      %p116 = scmp.ne.s32.totalorder %s101, %s115
      %p117 = scmp.eq.s32.totalorder %s28, 0
      %p118 = por %p116, %p117
      %s119 = ssub.s32 %s22, %s29
      %p120 = scmp.eq.s32.totalorder %s119, 0
      %s122 = sadd.s32 %s121, 1
      %s123 = scalar_select %p120, %s121, %s122
      %p126 = pneg %p120
      %p127 = scmp.eq.s32.totalorder %s22, 1
      %p128 = por %p126, %p127
      %p129 = scmp.ne.s32.totalorder %s121, %s124
      %p130 = scmp.eq.s32.totalorder %s22, 0
      %p131 = por %p129, %p130
      %p132 = scmp.ne.s32.totalorder %s121, %s124
      %p133 = scmp.eq.s32.totalorder %s27, 1
      %p134 = por %p132, %p133
      %p135 = scmp.ne.s32.totalorder %s124, %s125
      %p136 = scmp.eq.s32.totalorder %s27, 0
      %p137 = por %p135, %p136
      %p138 = scmp.ne.s32.totalorder %s124, %s125
      %p139 = scmp.eq.s32.totalorder %s28, 1
      %p140 = por %p138, %p139
      %p142 = scmp.ne.s32.totalorder %s125, %s141
      %p143 = scmp.eq.s32.totalorder %s28, 0
      %p144 = por %p142, %p143
      %s145 = ssub.s32 %s22, %s29
      %p146 = scmp.eq.s32.totalorder %s145, 0
      %s148 = sadd.s32 %s147, 1
      %s149 = scalar_select %p146, %s147, %s148
      %p152 = pneg %p146
      %p153 = scmp.eq.s32.totalorder %s22, 1
      %p154 = por %p152, %p153
      %p155 = scmp.ne.s32.totalorder %s147, %s150
      %p156 = scmp.eq.s32.totalorder %s22, 0
      %p157 = por %p155, %p156
      %p158 = scmp.ne.s32.totalorder %s147, %s150
      %p159 = scmp.eq.s32.totalorder %s27, 1
      %p160 = por %p158, %p159
      %p161 = scmp.ne.s32.totalorder %s150, %s151
      %p162 = scmp.eq.s32.totalorder %s27, 0
      %p163 = por %p161, %p162
      %p164 = scmp.ne.s32.totalorder %s150, %s151
      %p165 = scmp.eq.s32.totalorder %s28, 1
      %p166 = por %p164, %p165
      %p168 = scmp.ne.s32.totalorder %s151, %s167
      %p169 = scmp.eq.s32.totalorder %s28, 0
      %p170 = por %p168, %p169
      %p171 = scmp.le.s32.totalorder 1, %s22
      %p172 = scmp.lt.s32.totalorder %s22, 3
      %p173 = pnand %p171, %p172
      %p174 = pneg %p173
      // Predicated region
      $region9: #{tpu_custom_call.1} parent=5 // pred_check
        _
      $region10: #{tpu_custom_call.1} parent=5 // pred_check_branch
        %176 = sbr.rel (%p173) target = $region12
      $region11: #{tpu_custom_call.1} parent=5 // pred_region
        %s177 = ssub.s32 %s22, 1
        // Predicated region
        $region13: #{tpu_custom_call.1} parent=11 // pred_check
          %p178 = pneg %p69
        $region14: #{tpu_custom_call.1} parent=11 // pred_check_branch
          %180 = sbr.rel (%p178) target = $region16
        $region15: #{tpu_custom_call.1} parent=11 // pred_region
          %182 = vsyncadd [#allocation6], 0
          %s183 = sshll.u32 %s1, 4
          %s184 = int_to_ptr.hbm [resolvable:$true] %s183
          %s185 = sshll.u32 [#allocation5], 4
          %s186 = int_to_ptr.vmem [resolvable:$true] %s185
          %191 = dma.hbm_to_vmem [thread:$0]  %s184, 2048, %s186, [#allocation6], 128, 128, 8
        $region16: #{tpu_custom_call.1} parent=11 // pred_fallthru
          _
        // Predicated region
        $region17: #{tpu_custom_call.1} parent=11 // pred_check
          %p192 = pneg %p90
        $region18: #{tpu_custom_call.1} parent=11 // pred_check_branch
          %194 = sbr.rel (%p192) target = $region20
        $region19: #{tpu_custom_call.1} parent=11 // pred_region
          %196 = vsyncadd [#allocation6], 0
          %s197 = sshll.u32 %s2, 4
          %s198 = int_to_ptr.hbm [resolvable:$true] %s197
          %s199 = sshll.u32 [#allocation7], 4
          %s200 = int_to_ptr.vmem [resolvable:$true] %s199
          %205 = dma.hbm_to_vmem [thread:$0]  %s198, 2048, %s200, [#allocation6], 128, 128, 8
        $region20: #{tpu_custom_call.1} parent=11 // pred_fallthru
          _
        // Predicated region
        $region21: #{tpu_custom_call.1} parent=11 // pred_check
          %p206 = pneg %p111
        $region22: #{tpu_custom_call.1} parent=11 // pred_check_branch
          %208 = sbr.rel (%p206) target = $region24
        $region23: #{tpu_custom_call.1} parent=11 // pred_region
          _
        $region24: #{tpu_custom_call.1} parent=11 // pred_fallthru
          _
      $region12: #{tpu_custom_call.1} parent=5 // pred_fallthru
        _
      %p209 = scmp.lt.s32.totalorder %s22, 2
      // Predicated region
      $region25: #{tpu_custom_call.1} parent=5 // pred_check
        %p210 = pneg %p209
      $region26: #{tpu_custom_call.1} parent=5 // pred_check_branch
        %212 = sbr.rel (%p210) target = $region28
      $region27: #{tpu_custom_call.1} parent=5 // pred_region
        // Predicated region
        $region29: #{tpu_custom_call.1} parent=27 // pred_check
          %p213 = pneg %p42
        $region30: #{tpu_custom_call.1} parent=27 // pred_check_branch
          %215 = sbr.rel (%p213) target = $region32
        $region31: #{tpu_custom_call.1} parent=27 // pred_region
          %s216 = sand.u32 %s32, 1
          %s217 = scalar_lea.sflag [#allocation3], %s216
          %s218 = sand.u32 %s32, 1
          %s219 = smul.addr %s218, 64
          %s220 = scalar_lea.vmem [#allocation2], %s219
          %s221 = smul.u32 8, %s22
          %223 = vsyncadd %s217, 0
          %s224 = smul.addr %s221, 8
          %s225 = scalar_lea.hbm %s0, %s224
          %s226 = sshll.u32 %s225, 4
          %s227 = int_to_ptr.hbm [resolvable:$true] %s226
          %s228 = sshll.u32 %s220, 4
          %s229 = int_to_ptr.vmem [resolvable:$true] %s228
          %234 = dma.hbm_to_vmem [thread:$0]  %s227, 1024, %s229, %s217, 128, 128, 8
        $region32: #{tpu_custom_call.1} parent=27 // pred_fallthru
          _
      $region28: #{tpu_custom_call.1} parent=5 // pred_fallthru
        _
      %p235 = scmp.le.s32.totalorder 1, %s22
      %p236 = scmp.lt.s32.totalorder %s22, 3
      %p237 = pnand %p235, %p236
      %p238 = pneg %p237
      // Predicated region
      $region33: #{tpu_custom_call.1} parent=5 // pred_check
        _
      $region34: #{tpu_custom_call.1} parent=5 // pred_check_branch
        %240 = sbr.rel (%p237) target = $region36
      $region35: #{tpu_custom_call.1} parent=5 // pred_region
        %s241 = ssub.s32 %s22, 1
        %s242 = sand.u32 %s35, 1
        %s243 = scalar_lea.sflag [#allocation3], %s242
        %s244 = sand.u32 %s35, 1
        %s245 = smul.addr %s244, 64
        %s246 = scalar_lea.vmem [#allocation2], %s245
        // Predicated region
        $region37: #{tpu_custom_call.1} parent=35 // pred_check
          %p247 = pneg %p48
        $region38: #{tpu_custom_call.1} parent=35 // pred_check_branch
          %249 = sbr.rel (%p247) target = $region40
        $region39: #{tpu_custom_call.1} parent=35 // pred_region
          %251 = dma.done %s243, 1024
        $region40: #{tpu_custom_call.1} parent=35 // pred_fallthru
          _
        // Predicated region
        $region41: #{tpu_custom_call.1} parent=35 // pred_check
          %p252 = pneg %p69
        $region42: #{tpu_custom_call.1} parent=35 // pred_check_branch
          %254 = sbr.rel (%p252) target = $region44
        $region43: #{tpu_custom_call.1} parent=35 // pred_region
          %256 = dma.done [#allocation6], 2048
        $region44: #{tpu_custom_call.1} parent=35 // pred_fallthru
          _
        // Predicated region
        $region45: #{tpu_custom_call.1} parent=35 // pred_check
          %p257 = pneg %p90
        $region46: #{tpu_custom_call.1} parent=35 // pred_check_branch
          %259 = sbr.rel (%p257) target = $region48
        $region47: #{tpu_custom_call.1} parent=35 // pred_region
          %261 = dma.done [#allocation6], 2048
        $region48: #{tpu_custom_call.1} parent=35 // pred_fallthru
          _
        %s262 = sand.u32 %s35, 1
        %s263 = scalar_lea.sflag [#allocation3], %s262
        %s264 = sand.u32 %s35, 1
        %s265 = smul.addr %s264, 64
        %s266 = scalar_lea.vmem [#allocation2], %s265
        %p267 = pneg %p48
        %p268 = pneg %p45
        %p269 = pneg %p69
        %p270 = pneg %p66
        %p271 = pneg %p90
        %p272 = pneg %p87
        %p273 = pneg %p111
        %p274 = pneg %p108
        %p275 = pneg %p137
        %p276 = pneg %p134
        %s277 = sand.u32 %s124, 1
        %s278 = scalar_lea.sflag [#allocation4], %s277
        %s279 = sand.u32 %s124, 1
        %s280 = smul.addr %s279, 64
        %s281 = scalar_lea.vmem [#allocation8], %s280
        %p282 = pneg %p163
        %p283 = pneg %p160
        %s284 = sand.u32 %s150, 1
        %s285 = scalar_lea.sflag [#allocation10], %s284
        %s286 = sand.u32 %s150, 1
        %s287 = smul.addr %s286, 32
        %s288 = scalar_lea.vmem [#allocation9], %s287
        %s289 = smul.u32 8, %s27
        %s290 = smul.u32 8, %s27
        %s291 = smul.u32 8, %s27
        %v292 = vld [vmem:[%s246] sm:$0xff]
        %v293 = vld [vmem:[%s246 + $0x8] sm:$0xff]
        %v294 = vld [vmem:[%s246 + $0x10] sm:$0xff]
        %v295 = vld [vmem:[%s246 + $0x18] sm:$0xff]
        %v296 = vld [vmem:[%s246 + $0x20] sm:$0xff]
        %v297 = vld [vmem:[%s246 + $0x28] sm:$0xff]
        %v298 = vld [vmem:[%s246 + $0x30] sm:$0xff]
        %v299 = vld [vmem:[%s246 + $0x38] sm:$0xff]
        %v300 = vld [vmem:[#allocation5] sm:$0xff]
        %v301 = vld [vmem:[#allocation5 + $0x8] sm:$0xff]
        %v302 = vld [vmem:[#allocation5 + $0x10] sm:$0xff]
        %v303 = vld [vmem:[#allocation5 + $0x18] sm:$0xff]
        %v304 = vld [vmem:[#allocation5 + $0x20] sm:$0xff]
        %v305 = vld [vmem:[#allocation5 + $0x28] sm:$0xff]
        %v306 = vld [vmem:[#allocation5 + $0x30] sm:$0xff]
        %v307 = vld [vmem:[#allocation5 + $0x38] sm:$0xff]
        %v308 = vld [vmem:[#allocation5 + $0x40] sm:$0xff]
        %v309 = vld [vmem:[#allocation5 + $0x48] sm:$0xff]
        %v310 = vld [vmem:[#allocation5 + $0x50] sm:$0xff]
        %v311 = vld [vmem:[#allocation5 + $0x58] sm:$0xff]
        %v312 = vld [vmem:[#allocation5 + $0x60] sm:$0xff]
        %v313 = vld [vmem:[#allocation5 + $0x68] sm:$0xff]
        %v314 = vld [vmem:[#allocation5 + $0x70] sm:$0xff]
        %v315 = vld [vmem:[#allocation5 + $0x78] sm:$0xff]
        %v316 = vld [vmem:[%s3] sm:$0x1]
        %v318 = vperm.slane %v316, 0
        %320 = vmatpush.msra.mxu0 %v315
        %321 = vmatpush.msra.mxu0 %v314
        %322 = vmatpush.msra.mxu0 %v313
        %323 = vmatpush.msra.mxu0 %v312
        %324 = vmatpush.msra.mxu0 %v311
        %325 = vmatpush.msra.mxu0 %v310
        %326 = vmatpush.msra.mxu0 %v309
        %327 = vmatpush.msra.mxu0 %v308
        %328 = vmatpush.msra.mxu0 %v307
        %329 = vmatpush.msra.mxu0 %v306
        %330 = vmatpush.msra.mxu0 %v305
        %331 = vmatpush.msra.mxu0 %v304
        %332 = vmatpush.msra.mxu0 %v303
        %333 = vmatpush.msra.mxu0 %v302
        %334 = vmatpush.msra.mxu0 %v301
        %335 = vmatpush.msra.mxu0 %v300
        %336 = vmatmul.f32.gmra.mxu0 %v292
        %v337 = vpop.f32.mrf.mxu0
        %v338 = vadd.f32 %v318, %v337
        %339 = vmatmul.f32.gmra.mxu0 %v293
        %v340 = vpop.f32.mrf.mxu0
        %v341 = vadd.f32 %v318, %v340
        %342 = vmatmul.f32.gmra.mxu0 %v294
        %v343 = vpop.f32.mrf.mxu0
        %v344 = vadd.f32 %v318, %v343
        %345 = vmatmul.f32.gmra.mxu0 %v295
        %v346 = vpop.f32.mrf.mxu0
        %v347 = vadd.f32 %v318, %v346
        %348 = vmatmul.f32.gmra.mxu0 %v296
        %v349 = vpop.f32.mrf.mxu0
        %v350 = vadd.f32 %v318, %v349
        %351 = vmatmul.f32.gmra.mxu0 %v297
        %v352 = vpop.f32.mrf.mxu0
        %v353 = vadd.f32 %v318, %v352
        %354 = vmatmul.f32.gmra.mxu0 %v298
        %v355 = vpop.f32.mrf.mxu0
        %v356 = vadd.f32 %v318, %v355
        %357 = vmatmul.f32.gmra.mxu0 %v299
        %v358 = vpop.f32.mrf.mxu0
        %v359 = vadd.f32 %v318, %v358
        %360 = vdwg.mxu0
        %361 = vst [vmem:[%s281] sm:$0xff] %v338
        %362 = vst [vmem:[%s281 + $0x8] sm:$0xff] %v341
        %363 = vst [vmem:[%s281 + $0x10] sm:$0xff] %v344
        %364 = vst [vmem:[%s281 + $0x18] sm:$0xff] %v347
        %365 = vst [vmem:[%s281 + $0x20] sm:$0xff] %v350
        %366 = vst [vmem:[%s281 + $0x28] sm:$0xff] %v353
        %367 = vst [vmem:[%s281 + $0x30] sm:$0xff] %v356
        %368 = vst [vmem:[%s281 + $0x38] sm:$0xff] %v359
        %v369 = vld [vmem:[#allocation7] sm:$0xff]
        %v370 = vld [vmem:[#allocation7 + $0x8] sm:$0xff]
        %v371 = vld [vmem:[#allocation7 + $0x10] sm:$0xff]
        %v372 = vld [vmem:[#allocation7 + $0x18] sm:$0xff]
        %v373 = vld [vmem:[#allocation7 + $0x20] sm:$0xff]
        %v374 = vld [vmem:[#allocation7 + $0x28] sm:$0xff]
        %v375 = vld [vmem:[#allocation7 + $0x30] sm:$0xff]
        %v376 = vld [vmem:[#allocation7 + $0x38] sm:$0xff]
        %v377 = vld [vmem:[#allocation7 + $0x40] sm:$0xff]
        %v378 = vld [vmem:[#allocation7 + $0x48] sm:$0xff]
        %v379 = vld [vmem:[#allocation7 + $0x50] sm:$0xff]
        %v380 = vld [vmem:[#allocation7 + $0x58] sm:$0xff]
        %v381 = vld [vmem:[#allocation7 + $0x60] sm:$0xff]
        %v382 = vld [vmem:[#allocation7 + $0x68] sm:$0xff]
        %v383 = vld [vmem:[#allocation7 + $0x70] sm:$0xff]
        %v384 = vld [vmem:[#allocation7 + $0x78] sm:$0xff]
        %385 = vmatpush.msra.mxu0 %v384
        %386 = vmatpush.msra.mxu0 %v383
        %387 = vmatpush.msra.mxu0 %v382
        %388 = vmatpush.msra.mxu0 %v381
        %389 = vmatpush.msra.mxu0 %v380
        %390 = vmatpush.msra.mxu0 %v379
        %391 = vmatpush.msra.mxu0 %v378
        %392 = vmatpush.msra.mxu0 %v377
        %393 = vmatpush.msra.mxu0 %v376
        %394 = vmatpush.msra.mxu0 %v375
        %395 = vmatpush.msra.mxu0 %v374
        %396 = vmatpush.msra.mxu0 %v373
        %397 = vmatpush.msra.mxu0 %v372
        %398 = vmatpush.msra.mxu0 %v371
        %399 = vmatpush.msra.mxu0 %v370
        %400 = vmatpush.msra.mxu0 %v369
        %401 = vmatmul.f32.gmra.mxu0 %v292
        %v402 = vpop.f32.mrf.mxu0
        %v403 = vadd.f32 0.0, %v402
        %404 = vmatmul.f32.gmra.mxu0 %v293
        %v405 = vpop.f32.mrf.mxu0
        %v406 = vadd.f32 0.0, %v405
        %407 = vmatmul.f32.gmra.mxu0 %v294
        %v408 = vpop.f32.mrf.mxu0
        %v409 = vadd.f32 0.0, %v408
        %410 = vmatmul.f32.gmra.mxu0 %v295
        %v411 = vpop.f32.mrf.mxu0
        %v412 = vadd.f32 0.0, %v411
        %413 = vmatmul.f32.gmra.mxu0 %v296
        %v414 = vpop.f32.mrf.mxu0
        %v415 = vadd.f32 0.0, %v414
        %416 = vmatmul.f32.gmra.mxu0 %v297
        %v417 = vpop.f32.mrf.mxu0
        %v418 = vadd.f32 0.0, %v417
        %419 = vmatmul.f32.gmra.mxu0 %v298
        %v420 = vpop.f32.mrf.mxu0
        %v421 = vadd.f32 0.0, %v420
        %422 = vmatmul.f32.gmra.mxu0 %v299
        %v423 = vpop.f32.mrf.mxu0
        %v424 = vadd.f32 0.0, %v423
        %425 = vdwg.mxu0
        %v426 = vpack.c.bf16 %v403, %v403
        %v427 = vpack.c.bf16 %v406, %v406
        %v428 = vpack.c.bf16 %v409, %v409
        %v429 = vpack.c.bf16 %v412, %v412
        %v430 = vpack.c.bf16 %v415, %v415
        %v431 = vpack.c.bf16 %v418, %v418
        %v432 = vpack.c.bf16 %v421, %v421
        %v433 = vpack.c.bf16 %v424, %v424
        %434 = vst [vmem:[%s288] sm:$0xf] %v426
        %435 = vst [vmem:[%s288 + $0x4] sm:$0xf] %v427
        %436 = vst [vmem:[%s288 + $0x8] sm:$0xf] %v428
        %437 = vst [vmem:[%s288 + $0xc] sm:$0xf] %v429
        %438 = vst [vmem:[%s288 + $0x10] sm:$0xf] %v430
        %439 = vst [vmem:[%s288 + $0x14] sm:$0xf] %v431
        %440 = vst [vmem:[%s288 + $0x18] sm:$0xf] %v432
        %441 = vst [vmem:[%s288 + $0x1c] sm:$0xf] %v433
        %s442 = sand.u32 %s124, 1
        %s443 = scalar_lea.sflag [#allocation4], %s442
        %s444 = sand.u32 %s124, 1
        %s445 = smul.addr %s444, 64
        %s446 = scalar_lea.vmem [#allocation8], %s445
        %s447 = sand.u32 %s150, 1
        %s448 = scalar_lea.sflag [#allocation10], %s447
        %s449 = sand.u32 %s150, 1
        %s450 = smul.addr %s449, 32
        %s451 = scalar_lea.vmem [#allocation9], %s450
        // Predicated region
        $region49: #{tpu_custom_call.1} parent=35 // pred_check
          %p452 = pneg %p134
        $region50: #{tpu_custom_call.1} parent=35 // pred_check_branch
          %454 = sbr.rel (%p452) target = $region52
        $region51: #{tpu_custom_call.1} parent=35 // pred_region
          %s455 = smul.u32 8, %s27
          %457 = vsyncadd %s443, 0
          %s458 = smul.addr %s455, 8
          %s459 = scalar_lea.hbm %s4, %s458
          %s460 = sshll.u32 %s446, 4
          %s461 = int_to_ptr.vmem [resolvable:$true] %s460
          %s462 = sshll.u32 %s459, 4
          %s463 = int_to_ptr.hbm [resolvable:$true] %s462
          %468 = dma.vmem_to_hbm [thread:$0]  %s461, 1024, %s463, %s443, 128, 128, 8
        $region52: #{tpu_custom_call.1} parent=35 // pred_fallthru
          _
        // Predicated region
        $region53: #{tpu_custom_call.1} parent=35 // pred_check
          %p469 = pneg %p160
        $region54: #{tpu_custom_call.1} parent=35 // pred_check_branch
          %471 = sbr.rel (%p469) target = $region56
        $region55: #{tpu_custom_call.1} parent=35 // pred_region
          %s472 = smul.u32 8, %s27
          %474 = vsyncadd %s448, 0
          %s475 = smul.addr %s472, 4
          %s476 = scalar_lea.hbm %s5, %s475
          %s477 = sshll.u32 %s451, 4
          %s478 = int_to_ptr.vmem [resolvable:$true] %s477
          %s479 = sshll.u32 %s476, 4
          %s480 = int_to_ptr.hbm [resolvable:$true] %s479
          %485 = dma.vmem_to_hbm [thread:$0]  %s478, 512, %s480, %s448, 64, 64, 4
        $region56: #{tpu_custom_call.1} parent=35 // pred_fallthru
          _
      $region36: #{tpu_custom_call.1} parent=5 // pred_fallthru
        _
      %p486 = scmp.le.s32.totalorder 2, %s22
      // Predicated region
      $region57: #{tpu_custom_call.1} parent=5 // pred_check
        %p487 = pneg %p486
      $region58: #{tpu_custom_call.1} parent=5 // pred_check_branch
        %489 = sbr.rel (%p487) target = $region60
      $region59: #{tpu_custom_call.1} parent=5 // pred_region
        %s490 = ssub.s32 %s22, 2
        // Predicated region
        $region61: #{tpu_custom_call.1} parent=59 // pred_check
          %p491 = pneg %p140
        $region62: #{tpu_custom_call.1} parent=59 // pred_check_branch
          %493 = sbr.rel (%p491) target = $region64
        $region63: #{tpu_custom_call.1} parent=59 // pred_region
          %s494 = sand.u32 %s125, 1
          %s495 = scalar_lea.sflag [#allocation4], %s494
          %s496 = sand.u32 %s125, 1
          %s497 = smul.addr %s496, 64
          %s498 = scalar_lea.vmem [#allocation8], %s497
          %500 = dma.done %s495, 1024
        $region64: #{tpu_custom_call.1} parent=59 // pred_fallthru
          _
        // Predicated region
        $region65: #{tpu_custom_call.1} parent=59 // pred_check
          %p501 = pneg %p166
        $region66: #{tpu_custom_call.1} parent=59 // pred_check_branch
          %503 = sbr.rel (%p501) target = $region68
        $region67: #{tpu_custom_call.1} parent=59 // pred_region
          %s504 = sand.u32 %s151, 1
          %s505 = scalar_lea.sflag [#allocation10], %s504
          %s506 = sand.u32 %s151, 1
          %s507 = smul.addr %s506, 32
          %s508 = scalar_lea.vmem [#allocation9], %s507
          %510 = dma.done %s505, 512
        $region68: #{tpu_custom_call.1} parent=59 // pred_fallthru
          _
      $region60: #{tpu_custom_call.1} parent=5 // pred_fallthru
        _
    $region6: #{tpu_custom_call.1} parent=1 // loop_footer
      %s26 = sadd.s32 1, %s22
    $region7: #{tpu_custom_call.1} parent=1 // loop_footer_branch
      %21 = sbr.rel target = $region3
    $region8: #{tpu_custom_call.1} parent=1 // loop_exit
      _
    %511 = vsyncpa [#allocation3], 1
    %s512 = scalar_lea.sflag [#allocation3], 1
    %513 = vsyncpa %s512, 1
    %514 = vsyncpa [#allocation6], 1
    %515 = vsyncpa [#allocation4], 1
    %s516 = scalar_lea.sflag [#allocation4], 1
    %517 = vsyncpa %s516, 1
    %518 = vsyncpa [#allocation10], 1
    %s519 = scalar_lea.sflag [#allocation10], 1
    %520 = vsyncpa %s519, 1

</llo_original>
